<compile_context>
chip_gen: v5e
topology: v5e:2x2
jax: 0.10.0
libtpu: 0.0.40
codegen_flags: <defaults>
</compile_context>

<pallas_src>
import jax
import jax.numpy as jnp
from jax.experimental import pallas as pl
from jax.experimental.pallas import tpu as pltpu

# ----------------------------- config -------------------------------------
VOCAB_SIZE = 30          # Config['vocab_size']  (embedding table has VOCAB_SIZE+1 rows)
EMB_DIM = 32             # Config['embedding_dim'] (== hidden_size, required for 'cnn')
HIDDEN = 32              # Config['hidden_size']
KERNEL_SIZE = 3          # Config['kernel_size']
NUM_CLASSES = 2
BATCH = 2
SEQ = 8


# ----------------------------- Pallas kernel ------------------------------
def clspos_kernel(ids_ref, emb_ref, w_ref, out_ref):
    """Fused embedding gather -> Conv1d ('same', no bias) -> max-pool -> Linear.

    ids_ref : SMEM (B, S) int32      token ids (scalar prefetch)
    emb_ref : VMEM (V+1, H) f32      embedding table (row 0 == padding_idx, zeroed)
    w_ref   : VMEM (K*H + H + 8, H)  packed weights:
                rows [0, K*H)      conv weight  W2[k*H + i, o] = torch_w[o, i, k]
                rows [K*H, K*H+H)  classifier weight padded to H cols ([:, :2] used)
                row   K*H + H      classifier bias padded to H cols ([:2] used)
    out_ref : VMEM (B_TILE, 2) f32   logits for this batch group
    """
    B_TILE, NC = out_ref.shape
    _, H = emb_ref.shape
    S = ids_ref.shape[1]
    K = KERNEL_SIZE
    pad = (K - 1) // 2
    KH = K * H
    g = pl.program_id(0)

    zero_row = jnp.zeros((1, H), jnp.float32)

    # Fused gather + zero 'same' padding + im2col, all in registers / VMEM.
    win_blocks = []
    for b in range(B_TILE):                       # static (tiny) loops, fully unrolled
        rows = [zero_row] * pad
        for s in range(S):
            tok = ids_ref[g * B_TILE + b, s]      # scalar id from SMEM
            rows.append(emb_ref[pl.ds(tok, 1), :].astype(jnp.float32))
        rows = rows + [zero_row] * pad            # (S + 2*pad) rows of (1, H)
        # window k for output position s uses padded row (s + k)
        win_b = jnp.concatenate(
            [jnp.concatenate(rows[k:k + S], axis=0) for k in range(K)],
            axis=1)                               # (S, K*H)
        win_blocks.append(win_b)
    x2 = jnp.concatenate(win_blocks, axis=0)      # (B_TILE*S, K*H)

    # Conv1d (bias=False, 'same' padding) as ONE MXU matmul: (B*S, K*H) x (K*H, H).
    y = jnp.dot(x2, w_ref[0:KH, :], preferred_element_type=jnp.float32)   # (B*S, H)

    # MaxPool1d over the full sequence length -> (B_TILE, H)
    pooled = jnp.concatenate(
        [jnp.max(y[b * S:(b + 1) * S, :], axis=0, keepdims=True)
         for b in range(B_TILE)],
        axis=0)

    # Linear(H, 2) via H-wide padded weight + bias row; slice the 2 real columns.
    logits = (jnp.dot(pooled, w_ref[KH:KH + H, :],
                      preferred_element_type=jnp.float32)
              + w_ref[KH + H:KH + H + 1, :])
    out_ref[...] = logits[:, :NC].astype(out_ref.dtype)


# ----------------------------- weight packing (hoisted) --------------------
def pack_weights(conv_w, cls_w, cls_b):
    """Repack torch-layout weights ONCE (per model, not per call) into one VMEM tile."""
    H_out, H_in, K = conv_w.shape
    # torch Conv1d weight (out, in, K) -> im2col weight (K*in, out)
    w2 = jnp.transpose(conv_w, (2, 1, 0)).reshape(K * H_in, H_out)
    # torch Linear weight (2, H) -> (H, 2), padded to (H, H) so it shares lane width
    cls_pad = jnp.zeros((H_in, H_out), jnp.float32).at[:, :NUM_CLASSES].set(cls_w.T)
    # bias (2,) -> one padded row (sublane-aligned to 8 rows)
    bias_blk = jnp.zeros((8, H_out), jnp.float32).at[0, :NUM_CLASSES].set(cls_b)
    return jnp.concatenate([w2, cls_pad, bias_blk], axis=0)   # (K*H + H + 8, H)


# ----------------------------- wrapper ------------------------------------
def clspos_forward(x_ids, emb_table, packed_w, *, batch_tile=None):
    """Forward pass of clsposModel (model_type='cnn', pooling='max', y=None).

    No gather / pad / transpose in the wrapper: token ids go straight to SMEM
    (scalar prefetch) and the embedding lookup + padding happen inside the kernel.
    """
    B, S = x_ids.shape
    if batch_tile is None:
        batch_tile = B
    num_groups = B // batch_tile          # grid axis over batch groups (scales up)

    grid_spec = pltpu.PrefetchScalarGridSpec(
        num_scalar_prefetch=1,            # x_ids -> SMEM, passed to index_maps too
        grid=(num_groups,),
        in_specs=[
            pl.BlockSpec(emb_table.shape, lambda g, ids: (0, 0)),   # resident
            pl.BlockSpec(packed_w.shape, lambda g, ids: (0, 0)),    # resident
        ],
        out_specs=pl.BlockSpec((batch_tile, NUM_CLASSES), lambda g, ids: (g, 0)),
    )
    return pl.pallas_call(
        clspos_kernel,
        out_shape=jax.ShapeDtypeStruct((B, NUM_CLASSES), jnp.float32),
        grid_spec=grid_spec,
        compiler_params=pltpu.CompilerParams(
            dimension_semantics=("parallel",)),   # shards batch groups across TCs (v7x)
    )(x_ids, emb_table, packed_w)


# ----------------------------- params -------------------------------------
def init_params(key):
    k_emb, k_conv, k_w, k_b = jax.random.split(key, 4)
    emb = 0.02 * jax.random.normal(k_emb, (VOCAB_SIZE + 1, EMB_DIM), jnp.float32)
    emb = emb.at[0].set(0.0)                               # padding_idx=0
    conv_w = 0.02 * jax.random.normal(k_conv, (HIDDEN, HIDDEN, KERNEL_SIZE),
                                      jnp.float32)          # (out, in, K), no bias
    cls_w = 0.02 * jax.random.normal(k_w, (NUM_CLASSES, HIDDEN), jnp.float32)
    cls_b = 0.02 * jax.random.normal(k_b, (NUM_CLASSES,), jnp.float32)
    return {'embedding': emb, 'conv_w': conv_w, 'cls_w': cls_w, 'cls_b': cls_b}


# ----------------------------- main ---------------------------------------
if __name__ == "__main__":
    key = jax.random.PRNGKey(0)
    params = init_params(key)
    x_ids = jax.random.randint(jax.random.PRNGKey(1), (BATCH, SEQ), 0, VOCAB_SIZE + 1,
                               dtype=jnp.int32)

    # weight repacking hoisted out of the forward path (done once per model)
    packed_w = jax.block_until_ready(
        pack_weights(params['conv_w'], params['cls_w'], params['cls_b']))

    logits = clspos_forward(x_ids, params['embedding'], packed_w)
    jax.block_until_ready(logits)

    # pure-JAX reference check (same math outside Pallas)
    emb = params['embedding'][x_ids]
    pad = (KERNEL_SIZE - 1) // 2
    xpad = jnp.pad(emb, ((0, 0), (pad, pad), (0, 0)))
    y = jnp.zeros((BATCH, SEQ, HIDDEN), jnp.float32)
    for k in range(KERNEL_SIZE):
        y = y + jnp.einsum('bsh,ho->bso', xpad[:, k:k + SEQ, :],
                           params['conv_w'][:, :, k].T)
    ref = jnp.max(y, axis=1) @ params['cls_w'].T + params['cls_b']
    assert logits.shape == (BATCH, NUM_CLASSES)
    assert jnp.allclose(logits, ref, atol=1e-5, rtol=1e-5)

    # TODO(synk): pooling_style='avg', the cross-entropy (y is not None) branch,
    # and the bert/lstm/gru/rnn encoder variants are not wired; this implements
    # the model_type='cnn', max-pool inference path only.
    print("KERNEL_OK")
</pallas_src>

<mosaic_0001>
module attributes {stable_mosaic.version = 11 : i64} {
  func.func @clspos_kernel(%arg0: i32, %arg1: memref<2x8xi32, #tpu.memory_space<smem>>, %arg2: memref<31x32xf32, #tpu.memory_space<vmem>>, %arg3: memref<136x32xf32, #tpu.memory_space<vmem>>, %arg4: memref<2x2xf32, #tpu.memory_space<vmem>>) attributes {dimension_semantics = [#tpu.dimension_semantics<parallel>], iteration_bounds = array<i64: 1>, scalar_prefetch = 1 : i64, scratch_operands = 0 : i64, tpu.core_type = #tpu.core_type<tc>, window_params = [{pipeline_mode = #tpu.pipeline_mode<synchronous>, transform_indices = @transform_0, window_bounds = array<i64: 31, 32>}, {pipeline_mode = #tpu.pipeline_mode<synchronous>, transform_indices = @transform_1, window_bounds = array<i64: 136, 32>}, {transform_indices = @transform_2, window_bounds = array<i64: 2, 2>}]} {
    %cst = arith.constant 0.000000e+00 : f32
    %0 = vector.broadcast %cst : f32 to vector<1x32xf32>
    %c2_i32 = arith.constant 2 : i32
    %1 = arith.muli %arg0, %c2_i32 : i32
    %c0_i32 = arith.constant 0 : i32
    %2 = arith.addi %1, %c0_i32 : i32
    %3 = arith.index_cast %2 : i32 to index
    %c0 = arith.constant 0 : index
    %4 = memref.load %arg1[%3, %c0] : memref<2x8xi32, #tpu.memory_space<smem>>
    %5 = arith.index_cast %4 : i32 to index
    %c0_0 = arith.constant 0 : index
    %6 = vector.load %arg2[%5, %c0_0] : memref<31x32xf32, #tpu.memory_space<vmem>>, vector<1x32xf32>
    %c2_i32_1 = arith.constant 2 : i32
    %7 = arith.muli %arg0, %c2_i32_1 : i32
    %c0_i32_2 = arith.constant 0 : i32
    %8 = arith.addi %7, %c0_i32_2 : i32
    %9 = arith.index_cast %8 : i32 to index
    %c1 = arith.constant 1 : index
    %10 = memref.load %arg1[%9, %c1] : memref<2x8xi32, #tpu.memory_space<smem>>
    %11 = arith.index_cast %10 : i32 to index
    %c0_3 = arith.constant 0 : index
    %12 = vector.load %arg2[%11, %c0_3] : memref<31x32xf32, #tpu.memory_space<vmem>>, vector<1x32xf32>
    %c2_i32_4 = arith.constant 2 : i32
    %13 = arith.muli %arg0, %c2_i32_4 : i32
    %c0_i32_5 = arith.constant 0 : i32
    %14 = arith.addi %13, %c0_i32_5 : i32
    %15 = arith.index_cast %14 : i32 to index
    %c2 = arith.constant 2 : index
    %16 = memref.load %arg1[%15, %c2] : memref<2x8xi32, #tpu.memory_space<smem>>
    %17 = arith.index_cast %16 : i32 to index
    %c0_6 = arith.constant 0 : index
    %18 = vector.load %arg2[%17, %c0_6] : memref<31x32xf32, #tpu.memory_space<vmem>>, vector<1x32xf32>
    %c2_i32_7 = arith.constant 2 : i32
    %19 = arith.muli %arg0, %c2_i32_7 : i32
    %c0_i32_8 = arith.constant 0 : i32
    %20 = arith.addi %19, %c0_i32_8 : i32
    %21 = arith.index_cast %20 : i32 to index
    %c3 = arith.constant 3 : index
    %22 = memref.load %arg1[%21, %c3] : memref<2x8xi32, #tpu.memory_space<smem>>
    %23 = arith.index_cast %22 : i32 to index
    %c0_9 = arith.constant 0 : index
    %24 = vector.load %arg2[%23, %c0_9] : memref<31x32xf32, #tpu.memory_space<vmem>>, vector<1x32xf32>
    %c2_i32_10 = arith.constant 2 : i32
    %25 = arith.muli %arg0, %c2_i32_10 : i32
    %c0_i32_11 = arith.constant 0 : i32
    %26 = arith.addi %25, %c0_i32_11 : i32
    %27 = arith.index_cast %26 : i32 to index
    %c4 = arith.constant 4 : index
    %28 = memref.load %arg1[%27, %c4] : memref<2x8xi32, #tpu.memory_space<smem>>
    %29 = arith.index_cast %28 : i32 to index
    %c0_12 = arith.constant 0 : index
    %30 = vector.load %arg2[%29, %c0_12] : memref<31x32xf32, #tpu.memory_space<vmem>>, vector<1x32xf32>
    %c2_i32_13 = arith.constant 2 : i32
    %31 = arith.muli %arg0, %c2_i32_13 : i32
    %c0_i32_14 = arith.constant 0 : i32
    %32 = arith.addi %31, %c0_i32_14 : i32
    %33 = arith.index_cast %32 : i32 to index
    %c5 = arith.constant 5 : index
    %34 = memref.load %arg1[%33, %c5] : memref<2x8xi32, #tpu.memory_space<smem>>
    %35 = arith.index_cast %34 : i32 to index
    %c0_15 = arith.constant 0 : index
    %36 = vector.load %arg2[%35, %c0_15] : memref<31x32xf32, #tpu.memory_space<vmem>>, vector<1x32xf32>
    %c2_i32_16 = arith.constant 2 : i32
    %37 = arith.muli %arg0, %c2_i32_16 : i32
    %c0_i32_17 = arith.constant 0 : i32
    %38 = arith.addi %37, %c0_i32_17 : i32
    %39 = arith.index_cast %38 : i32 to index
    %c6 = arith.constant 6 : index
    %40 = memref.load %arg1[%39, %c6] : memref<2x8xi32, #tpu.memory_space<smem>>
    %41 = arith.index_cast %40 : i32 to index
    %c0_18 = arith.constant 0 : index
    %42 = vector.load %arg2[%41, %c0_18] : memref<31x32xf32, #tpu.memory_space<vmem>>, vector<1x32xf32>
    %c2_i32_19 = arith.constant 2 : i32
    %43 = arith.muli %arg0, %c2_i32_19 : i32
    %c0_i32_20 = arith.constant 0 : i32
    %44 = arith.addi %43, %c0_i32_20 : i32
    %45 = arith.index_cast %44 : i32 to index
    %c7 = arith.constant 7 : index
    %46 = memref.load %arg1[%45, %c7] : memref<2x8xi32, #tpu.memory_space<smem>>
    %47 = arith.index_cast %46 : i32 to index
    %c0_21 = arith.constant 0 : index
    %48 = vector.load %arg2[%47, %c0_21] : memref<31x32xf32, #tpu.memory_space<vmem>>, vector<1x32xf32>
    %49 = tpu.concatenate %0, %6, %12, %18, %24, %30, %36, %42 in 0 : vector<1x32xf32>, vector<1x32xf32>, vector<1x32xf32>, vector<1x32xf32>, vector<1x32xf32>, vector<1x32xf32>, vector<1x32xf32>, vector<1x32xf32> -> vector<8x32xf32>
    %50 = tpu.concatenate %6, %12, %18, %24, %30, %36, %42, %48 in 0 : vector<1x32xf32>, vector<1x32xf32>, vector<1x32xf32>, vector<1x32xf32>, vector<1x32xf32>, vector<1x32xf32>, vector<1x32xf32>, vector<1x32xf32> -> vector<8x32xf32>
    %51 = tpu.concatenate %12, %18, %24, %30, %36, %42, %48, %0 in 0 : vector<1x32xf32>, vector<1x32xf32>, vector<1x32xf32>, vector<1x32xf32>, vector<1x32xf32>, vector<1x32xf32>, vector<1x32xf32>, vector<1x32xf32> -> vector<8x32xf32>
    %52 = tpu.concatenate %49, %50, %51 in 1 : vector<8x32xf32>, vector<8x32xf32>, vector<8x32xf32> -> vector<8x96xf32>
    %c2_i32_22 = arith.constant 2 : i32
    %53 = arith.muli %arg0, %c2_i32_22 : i32
    %c1_i32 = arith.constant 1 : i32
    %54 = arith.addi %53, %c1_i32 : i32
    %55 = arith.index_cast %54 : i32 to index
    %c0_23 = arith.constant 0 : index
    %56 = memref.load %arg1[%55, %c0_23] : memref<2x8xi32, #tpu.memory_space<smem>>
    %57 = arith.index_cast %56 : i32 to index
    %c0_24 = arith.constant 0 : index
    %58 = vector.load %arg2[%57, %c0_24] : memref<31x32xf32, #tpu.memory_space<vmem>>, vector<1x32xf32>
    %c2_i32_25 = arith.constant 2 : i32
    %59 = arith.muli %arg0, %c2_i32_25 : i32
    %c1_i32_26 = arith.constant 1 : i32
    %60 = arith.addi %59, %c1_i32_26 : i32
    %61 = arith.index_cast %60 : i32 to index
    %c1_27 = arith.constant 1 : index
    %62 = memref.load %arg1[%61, %c1_27] : memref<2x8xi32, #tpu.memory_space<smem>>
    %63 = arith.index_cast %62 : i32 to index
    %c0_28 = arith.constant 0 : index
    %64 = vector.load %arg2[%63, %c0_28] : memref<31x32xf32, #tpu.memory_space<vmem>>, vector<1x32xf32>
    %c2_i32_29 = arith.constant 2 : i32
    %65 = arith.muli %arg0, %c2_i32_29 : i32
    %c1_i32_30 = arith.constant 1 : i32
    %66 = arith.addi %65, %c1_i32_30 : i32
    %67 = arith.index_cast %66 : i32 to index
    %c2_31 = arith.constant 2 : index
    %68 = memref.load %arg1[%67, %c2_31] : memref<2x8xi32, #tpu.memory_space<smem>>
    %69 = arith.index_cast %68 : i32 to index
    %c0_32 = arith.constant 0 : index
    %70 = vector.load %arg2[%69, %c0_32] : memref<31x32xf32, #tpu.memory_space<vmem>>, vector<1x32xf32>
    %c2_i32_33 = arith.constant 2 : i32
    %71 = arith.muli %arg0, %c2_i32_33 : i32
    %c1_i32_34 = arith.constant 1 : i32
    %72 = arith.addi %71, %c1_i32_34 : i32
    %73 = arith.index_cast %72 : i32 to index
    %c3_35 = arith.constant 3 : index
    %74 = memref.load %arg1[%73, %c3_35] : memref<2x8xi32, #tpu.memory_space<smem>>
    %75 = arith.index_cast %74 : i32 to index
    %c0_36 = arith.constant 0 : index
    %76 = vector.load %arg2[%75, %c0_36] : memref<31x32xf32, #tpu.memory_space<vmem>>, vector<1x32xf32>
    %c2_i32_37 = arith.constant 2 : i32
    %77 = arith.muli %arg0, %c2_i32_37 : i32
    %c1_i32_38 = arith.constant 1 : i32
    %78 = arith.addi %77, %c1_i32_38 : i32
    %79 = arith.index_cast %78 : i32 to index
    %c4_39 = arith.constant 4 : index
    %80 = memref.load %arg1[%79, %c4_39] : memref<2x8xi32, #tpu.memory_space<smem>>
    %81 = arith.index_cast %80 : i32 to index
    %c0_40 = arith.constant 0 : index
    %82 = vector.load %arg2[%81, %c0_40] : memref<31x32xf32, #tpu.memory_space<vmem>>, vector<1x32xf32>
    %c2_i32_41 = arith.constant 2 : i32
    %83 = arith.muli %arg0, %c2_i32_41 : i32
    %c1_i32_42 = arith.constant 1 : i32
    %84 = arith.addi %83, %c1_i32_42 : i32
    %85 = arith.index_cast %84 : i32 to index
    %c5_43 = arith.constant 5 : index
    %86 = memref.load %arg1[%85, %c5_43] : memref<2x8xi32, #tpu.memory_space<smem>>
    %87 = arith.index_cast %86 : i32 to index
    %c0_44 = arith.constant 0 : index
    %88 = vector.load %arg2[%87, %c0_44] : memref<31x32xf32, #tpu.memory_space<vmem>>, vector<1x32xf32>
    %c2_i32_45 = arith.constant 2 : i32
    %89 = arith.muli %arg0, %c2_i32_45 : i32
    %c1_i32_46 = arith.constant 1 : i32
    %90 = arith.addi %89, %c1_i32_46 : i32
    %91 = arith.index_cast %90 : i32 to index
    %c6_47 = arith.constant 6 : index
    %92 = memref.load %arg1[%91, %c6_47] : memref<2x8xi32, #tpu.memory_space<smem>>
    %93 = arith.index_cast %92 : i32 to index
    %c0_48 = arith.constant 0 : index
    %94 = vector.load %arg2[%93, %c0_48] : memref<31x32xf32, #tpu.memory_space<vmem>>, vector<1x32xf32>
    %c2_i32_49 = arith.constant 2 : i32
    %95 = arith.muli %arg0, %c2_i32_49 : i32
    %c1_i32_50 = arith.constant 1 : i32
    %96 = arith.addi %95, %c1_i32_50 : i32
    %97 = arith.index_cast %96 : i32 to index
    %c7_51 = arith.constant 7 : index
    %98 = memref.load %arg1[%97, %c7_51] : memref<2x8xi32, #tpu.memory_space<smem>>
    %99 = arith.index_cast %98 : i32 to index
    %c0_52 = arith.constant 0 : index
    %100 = vector.load %arg2[%99, %c0_52] : memref<31x32xf32, #tpu.memory_space<vmem>>, vector<1x32xf32>
    %101 = tpu.concatenate %0, %58, %64, %70, %76, %82, %88, %94 in 0 : vector<1x32xf32>, vector<1x32xf32>, vector<1x32xf32>, vector<1x32xf32>, vector<1x32xf32>, vector<1x32xf32>, vector<1x32xf32>, vector<1x32xf32> -> vector<8x32xf32>
    %102 = tpu.concatenate %58, %64, %70, %76, %82, %88, %94, %100 in 0 : vector<1x32xf32>, vector<1x32xf32>, vector<1x32xf32>, vector<1x32xf32>, vector<1x32xf32>, vector<1x32xf32>, vector<1x32xf32>, vector<1x32xf32> -> vector<8x32xf32>
    %103 = tpu.concatenate %64, %70, %76, %82, %88, %94, %100, %0 in 0 : vector<1x32xf32>, vector<1x32xf32>, vector<1x32xf32>, vector<1x32xf32>, vector<1x32xf32>, vector<1x32xf32>, vector<1x32xf32>, vector<1x32xf32> -> vector<8x32xf32>
    %104 = tpu.concatenate %101, %102, %103 in 1 : vector<8x32xf32>, vector<8x32xf32>, vector<8x32xf32> -> vector<8x96xf32>
    %105 = tpu.concatenate %52, %104 in 0 : vector<8x96xf32>, vector<8x96xf32> -> vector<16x96xf32>
    %c0_53 = arith.constant 0 : index
    %c0_54 = arith.constant 0 : index
    %106 = vector.load %arg3[%c0_53, %c0_54] : memref<136x32xf32, #tpu.memory_space<vmem>>, vector<96x32xf32>
    %cst_55 = arith.constant dense<0.000000e+00> : vector<16x32xf32>
    %107 = tpu.matmul %105, %106, %cst_55 {dimension_numbers = #tpu.dot_dimension_numbers<[1], [0], [0], [1], [0, 0, 1, 1], [], []>} : vector<16x96xf32>, vector<96x32xf32>, vector<16x32xf32> -> vector<16x32xf32>
    %108 = vector.extract_strided_slice %107 {offsets = [0, 0], sizes = [8, 32], strides = [1, 1]} : vector<16x32xf32> to vector<8x32xf32>
    %cst_56 = arith.constant dense<0xFF800000> : vector<32xf32>
    %109 = vector.multi_reduction <maximumf>, %108, %cst_56 [0] : vector<8x32xf32> to vector<32xf32>
    %110 = vector.shape_cast %109 : vector<32xf32> to vector<1x32xf32>
    %111 = vector.extract_strided_slice %107 {offsets = [8, 0], sizes = [8, 32], strides = [1, 1]} : vector<16x32xf32> to vector<8x32xf32>
    %cst_57 = arith.constant dense<0xFF800000> : vector<32xf32>
    %112 = vector.multi_reduction <maximumf>, %111, %cst_57 [0] : vector<8x32xf32> to vector<32xf32>
    %113 = vector.shape_cast %112 : vector<32xf32> to vector<1x32xf32>
    %114 = tpu.concatenate %110, %113 in 0 : vector<1x32xf32>, vector<1x32xf32> -> vector<2x32xf32>
    %c96 = arith.constant 96 : index
    %c0_58 = arith.constant 0 : index
    %115 = vector.load %arg3[%c96, %c0_58] : memref<136x32xf32, #tpu.memory_space<vmem>>, vector<32x32xf32>
    %cst_59 = arith.constant dense<0.000000e+00> : vector<2x32xf32>
    %116 = tpu.matmul %114, %115, %cst_59 {dimension_numbers = #tpu.dot_dimension_numbers<[1], [0], [0], [1], [0, 0, 1, 1], [], []>} : vector<2x32xf32>, vector<32x32xf32>, vector<2x32xf32> -> vector<2x32xf32>
    %c128 = arith.constant 128 : index
    %c0_60 = arith.constant 0 : index
    %117 = vector.load %arg3[%c128, %c0_60] : memref<136x32xf32, #tpu.memory_space<vmem>>, vector<1x32xf32>
    %118 = vector.broadcast %117 : vector<1x32xf32> to vector<2x32xf32>
    %119 = arith.addf %116, %118 : vector<2x32xf32>
    %120 = vector.extract_strided_slice %119 {offsets = [0, 0], sizes = [2, 2], strides = [1, 1]} : vector<2x32xf32> to vector<2x2xf32>
    %c0_61 = arith.constant 0 : index
    %c0_62 = arith.constant 0 : index
    %121 = vector.load %arg4[%c0_61, %c0_62] : memref<2x2xf32, #tpu.memory_space<vmem>>, vector<2x2xf32>
    tpu.vector_store %arg4[%c0_61, %c0_62], %120 {strides = array<i32>} : memref<2x2xf32, #tpu.memory_space<vmem>>, vector<2x2xf32>,
    return
  }
  func.func @transform_0(%arg0: i32, %arg1: memref<2x8xi32, #tpu.memory_space<smem>>) -> (i32, i32) {
    %c0_i32 = arith.constant 0 : i32
    %c0_i32_0 = arith.constant 0 : i32
    %c0_i32_1 = arith.constant 0 : i32
    return %c0_i32, %c0_i32_0 : i32, i32
  }
  func.func @transform_1(%arg0: i32, %arg1: memref<2x8xi32, #tpu.memory_space<smem>>) -> (i32, i32) {
    %c0_i32 = arith.constant 0 : i32
    %c0_i32_0 = arith.constant 0 : i32
    %c0_i32_1 = arith.constant 0 : i32
    return %c0_i32, %c0_i32_0 : i32, i32
  }
  func.func @transform_2(%arg0: i32, %arg1: memref<2x8xi32, #tpu.memory_space<smem>>) -> (i32, i32) {
    %c0_i32 = arith.constant 0 : i32
    %c0_i32_0 = arith.constant 0 : i32
    return %arg0, %c0_i32 : i32, i32
  }
}

</mosaic_0001>

<llo_original>
// kernel: tpu_custom_call.1
$region0: #{tpu_custom_call.1}
  #allocation0 [shape = 'u32[]', space=smem, size = 0x4, offset = 0x4, fixed_abs, tag = 'smem constant byte address 0x4 - core index']
  #allocation1 [shape = 'u32[72,128]{1,0:T(1,128)}', space=vmem, size = 0x9000, scoped, tag = 'internal scratch']
  #allocation2 [shape = 's32[1]{0}', space=sflag, size = 0x4, scoped, tag = 'scoped memory for tpu_custom_call.1']
  #allocation3 [shape = 'u8[1024]{0}', space=smem, size = 0x400, scoped, tag = 'prefetched SMEM operand 0']
  %s0 = inlined_call_operand.vmem [shape: s32[2,8], index: 0, kind: input, shape index: {}]
  %s1 = inlined_call_operand.vmem [shape: f32[31,32], index: 1, kind: input, shape index: {}]
  %s2 = inlined_call_operand.vmem [shape: f32[136,32], index: 2, kind: input, shape index: {}]
  %s3 = inlined_call_operand.hbm [shape: f32[2,2], index: 3, kind: output, shape index: {}]
  %s4 = sld [smem:[#allocation0]]
  $region18: #{tpu_custom_call.1} parent=0
    _
  %s6 = ssub.s32 1, %s4
  %s7 = scalar_select 0, %s6, %s4
  %s9 = sshll.u32 %s0, 4
  %s10 = int_to_ptr.vmem [resolvable:$true] %s9
  %12 = dma.vmem_to_smem %s10, 32, [#allocation3], [#allocation2]
  %14 = dma.done [#allocation2], 32
  %15 = sfence
  $region1: #{tpu_custom_call.1} parent=0
    #allocation4 [shape = 'u8[1024]{0}', space=vmem, size = 0x400, scoped, tag = 'output window, operand 0, single buffered']
    #allocation5 [shape = 's32[1]{0}', space=sflag, size = 0x4, scoped, tag = 'scoped memory for tpu_custom_call.1']
    %16 = vsyncpa [#allocation5], 0
    // Predicated region
    $region2: #{tpu_custom_call.1} parent=1 // pred_check
      _
    $region3: #{tpu_custom_call.1} parent=1 // pred_check_branch
      %18 = sbr.rel (0) target = $region5
    $region4: #{tpu_custom_call.1} parent=1 // pred_region
      _
    $region5: #{tpu_custom_call.1} parent=1 // pred_fallthru
      _
    // Predicated region
    $region6: #{tpu_custom_call.1} parent=1 // pred_check
      _
    $region7: #{tpu_custom_call.1} parent=1 // pred_check_branch
      %20 = sbr.rel (0) target = $region9
    $region8: #{tpu_custom_call.1} parent=1 // pred_region
      _
    $region9: #{tpu_custom_call.1} parent=1 // pred_fallthru
      _
    %s21 = smul.u32 0, 2
    %s22 = smul.u32 %s21, 128
    %s23 = sld [smem:[#allocation3 + %s22]]
    %s24 = scalar_lea.vmem %s1, %s23
    %v25 = vld [vmem:[%s24] sm:$0x1]
    %s26 = sadd.s32 %s22, 1
    %s27 = sld [smem:[#allocation3 + %s26]]
    %s28 = scalar_lea.vmem %s1, %s27
    %v29 = vld [vmem:[%s28] sm:$0x1]
    %s30 = sadd.s32 %s22, 2
    %s31 = sld [smem:[#allocation3 + %s30]]
    %s32 = scalar_lea.vmem %s1, %s31
    %v33 = vld [vmem:[%s32] sm:$0x1]
    %s34 = sadd.s32 %s22, 3
    %s35 = sld [smem:[#allocation3 + %s34]]
    %s36 = scalar_lea.vmem %s1, %s35
    %v37 = vld [vmem:[%s36] sm:$0x1]
    %s38 = sadd.s32 %s22, 4
    %s39 = sld [smem:[#allocation3 + %s38]]
    %s40 = scalar_lea.vmem %s1, %s39
    %v41 = vld [vmem:[%s40] sm:$0x1]
    %s42 = sadd.s32 %s22, 5
    %s43 = sld [smem:[#allocation3 + %s42]]
    %s44 = scalar_lea.vmem %s1, %s43
    %v45 = vld [vmem:[%s44] sm:$0x1]
    %s46 = sadd.s32 %s22, 6
    %s47 = sld [smem:[#allocation3 + %s46]]
    %s48 = scalar_lea.vmem %s1, %s47
    %v49 = vld [vmem:[%s48] sm:$0x1]
    %s50 = sadd.s32 %s22, 7
    %s51 = sld [smem:[#allocation3 + %s50]]
    %s52 = scalar_lea.vmem %s1, %s51
    %v53 = vld [vmem:[%s52] sm:$0x1]
    %v55 = vrot.slane %v25, 7
    %v58 = vrot.slane %v29, 6
    %v61 = vrot.slane %v33, 5
    %v64 = vrot.slane %v37, 4
    %v67 = vrot.slane %v41, 3
    %v70 = vrot.slane %v45, 2
    %v73 = vrot.slane %v49, 1
    %vm75 = vcmask 1040384
    %v76 = vsel %vm75, 0.0, %v55
    %vm77 = vcmask 1041408
    %v78 = vsel %vm77, %v76, %v58
    %vm79 = vcmask 1042432
    %v80 = vsel %vm79, %v78, %v61
    %vm81 = vcmask 1043456
    %v82 = vsel %vm81, %v80, %v64
    %vm83 = vcmask 1044480
    %v84 = vsel %vm83, %v82, %v67
    %vm85 = vcmask 1045504
    %v86 = vsel %vm85, %v84, %v70
    %vm87 = vcmask 1046528
    %v88 = vsel %vm87, %v86, %v73
    %v89 = vrot.slane %v29, 7
    %v91 = vrot.slane %v33, 6
    %v93 = vrot.slane %v37, 5
    %v95 = vrot.slane %v41, 4
    %v97 = vrot.slane %v45, 3
    %v99 = vrot.slane %v49, 2
    %v102 = vrot.slane %v53, 1
    %v104 = vsel %vm75, %v25, %v89
    %v105 = vsel %vm77, %v104, %v91
    %v106 = vsel %vm79, %v105, %v93
    %v107 = vsel %vm81, %v106, %v95
    %v108 = vsel %vm83, %v107, %v97
    %v109 = vsel %vm85, %v108, %v99
    %v110 = vsel %vm87, %v109, %v102
    %v111 = vrot.slane %v33, 7
    %v113 = vrot.slane %v37, 6
    %v115 = vrot.slane %v41, 5
    %v117 = vrot.slane %v45, 4
    %v119 = vrot.slane %v49, 3
    %v121 = vrot.slane %v53, 2
    %v123 = vsel %vm75, %v29, %v111
    %v124 = vsel %vm77, %v123, %v113
    %v125 = vsel %vm79, %v124, %v115
    %v126 = vsel %vm81, %v125, %v117
    %v127 = vsel %vm83, %v126, %v119
    %v128 = vsel %vm85, %v127, %v121
    %v129 = vsel %vm87, %v128, 0.0
    %131 = vrot.lane.b32.xlu0 %v110, 32
    %v132 = vpop.permute.xlu0 %131
    %135 = vrot.lane.b32.xlu0 %v129, 64
    %v136 = vpop.permute.xlu0 %135
    %vm138 = vcmask 261120
    %v139 = vsel %vm138, %v88, %v132
    %vm140 = vcmask 523264
    %v141 = vsel %vm140, %v139, %v136
    %s142 = sadd.s32 %s21, 1
    %s143 = smul.u32 %s142, 128
    %s144 = sld [smem:[#allocation3 + %s143]]
    %s145 = scalar_lea.vmem %s1, %s144
    %v146 = vld [vmem:[%s145] sm:$0x1]
    %s147 = sadd.s32 %s143, 1
    %s148 = sld [smem:[#allocation3 + %s147]]
    %s149 = scalar_lea.vmem %s1, %s148
    %v150 = vld [vmem:[%s149] sm:$0x1]
    %s151 = sadd.s32 %s143, 2
    %s152 = sld [smem:[#allocation3 + %s151]]
    %s153 = scalar_lea.vmem %s1, %s152
    %v154 = vld [vmem:[%s153] sm:$0x1]
    %s155 = sadd.s32 %s143, 3
    %s156 = sld [smem:[#allocation3 + %s155]]
    %s157 = scalar_lea.vmem %s1, %s156
    %v158 = vld [vmem:[%s157] sm:$0x1]
    %s159 = sadd.s32 %s143, 4
    %s160 = sld [smem:[#allocation3 + %s159]]
    %s161 = scalar_lea.vmem %s1, %s160
    %v162 = vld [vmem:[%s161] sm:$0x1]
    %s163 = sadd.s32 %s143, 5
    %s164 = sld [smem:[#allocation3 + %s163]]
    %s165 = scalar_lea.vmem %s1, %s164
    %v166 = vld [vmem:[%s165] sm:$0x1]
    %s167 = sadd.s32 %s143, 6
    %s168 = sld [smem:[#allocation3 + %s167]]
    %s169 = scalar_lea.vmem %s1, %s168
    %v170 = vld [vmem:[%s169] sm:$0x1]
    %s171 = sadd.s32 %s143, 7
    %s172 = sld [smem:[#allocation3 + %s171]]
    %s173 = scalar_lea.vmem %s1, %s172
    %v174 = vld [vmem:[%s173] sm:$0x1]
    %v176 = vrot.slane %v146, 7
    %v179 = vrot.slane %v150, 6
    %v182 = vrot.slane %v154, 5
    %v185 = vrot.slane %v158, 4
    %v188 = vrot.slane %v162, 3
    %v191 = vrot.slane %v166, 2
    %v194 = vrot.slane %v170, 1
    %v196 = vsel %vm75, 0.0, %v176
    %v197 = vsel %vm77, %v196, %v179
    %v198 = vsel %vm79, %v197, %v182
    %v199 = vsel %vm81, %v198, %v185
    %v200 = vsel %vm83, %v199, %v188
    %v201 = vsel %vm85, %v200, %v191
    %v202 = vsel %vm87, %v201, %v194
    %v203 = vrot.slane %v150, 7
    %v205 = vrot.slane %v154, 6
    %v207 = vrot.slane %v158, 5
    %v209 = vrot.slane %v162, 4
    %v211 = vrot.slane %v166, 3
    %v213 = vrot.slane %v170, 2
    %v216 = vrot.slane %v174, 1
    %v218 = vsel %vm75, %v146, %v203
    %v219 = vsel %vm77, %v218, %v205
    %v220 = vsel %vm79, %v219, %v207
    %v221 = vsel %vm81, %v220, %v209
    %v222 = vsel %vm83, %v221, %v211
    %v223 = vsel %vm85, %v222, %v213
    %v224 = vsel %vm87, %v223, %v216
    %v225 = vrot.slane %v154, 7
    %v227 = vrot.slane %v158, 6
    %v229 = vrot.slane %v162, 5
    %v231 = vrot.slane %v166, 4
    %v233 = vrot.slane %v170, 3
    %v235 = vrot.slane %v174, 2
    %v237 = vsel %vm75, %v150, %v225
    %v238 = vsel %vm77, %v237, %v227
    %v239 = vsel %vm79, %v238, %v229
    %v240 = vsel %vm81, %v239, %v231
    %v241 = vsel %vm83, %v240, %v233
    %v242 = vsel %vm85, %v241, %v235
    %v243 = vsel %vm87, %v242, 0.0
    %245 = vrot.lane.b32.xlu0 %v224, 32
    %v246 = vpop.permute.xlu0 %245
    %249 = vrot.lane.b32.xlu0 %v243, 64
    %v250 = vpop.permute.xlu0 %249
    %v252 = vsel %vm138, %v202, %v246
    %v253 = vsel %vm140, %v252, %v250
    %v254 = vld [vmem:[%s2] sm:$0xff]
    %v255 = vld [vmem:[%s2 + $0x8] sm:$0xff]
    %v256 = vld [vmem:[%s2 + $0x10] sm:$0xff]
    %v257 = vld [vmem:[%s2 + $0x18] sm:$0xff]
    %v258 = vld [vmem:[%s2 + $0x20] sm:$0xff]
    %v259 = vld [vmem:[%s2 + $0x28] sm:$0xff]
    %v260 = vld [vmem:[%s2 + $0x30] sm:$0xff]
    %v261 = vld [vmem:[%s2 + $0x38] sm:$0xff]
    %v262 = vld [vmem:[%s2 + $0x40] sm:$0xff]
    %v263 = vld [vmem:[%s2 + $0x48] sm:$0xff]
    %v264 = vld [vmem:[%s2 + $0x50] sm:$0xff]
    %v265 = vld [vmem:[%s2 + $0x58] sm:$0xff]
    %vm266 = vcmask 785408
    %v268 = vsel %vm266, %v141, 0
    %v271 = vsel %vm266, %v253, 0
    %273 = vmatpush.msra.mxu0 0.0
    %274 = vmatpush.msra.mxu0 0.0
    %275 = vmatpush.msra.mxu0 0.0
    %276 = vmatpush.msra.mxu0 0.0
    %277 = vmatpush.msra.mxu0 %v265
    %278 = vmatpush.msra.mxu0 %v264
    %279 = vmatpush.msra.mxu0 %v263
    %280 = vmatpush.msra.mxu0 %v262
    %281 = vmatpush.msra.mxu0 %v261
    %282 = vmatpush.msra.mxu0 %v260
    %283 = vmatpush.msra.mxu0 %v259
    %284 = vmatpush.msra.mxu0 %v258
    %285 = vmatpush.msra.mxu0 %v257
    %286 = vmatpush.msra.mxu0 %v256
    %287 = vmatpush.msra.mxu0 %v255
    %288 = vmatpush.msra.mxu0 %v254
    %289 = vmatmul.f32.gmra.mxu0 %v268
    %v290 = vpop.f32.mrf.mxu0
    %v291 = vadd.f32 0.0, %v290
    %292 = vmatmul.f32.gmra.mxu0 %v271
    %v293 = vpop.f32.mrf.mxu0
    %v294 = vadd.f32 0.0, %v293
    %295 = vdwg.mxu0
    %v296 = vsel %vm138, %v291, -inf
    %v297 = vrot.slane %v296, 4
    %v298 = vmax.f32 %v296, %v297
    %v299 = vrot.slane %v298, 2
    %v300 = vmax.f32 %v298, %v299
    %v301 = vrot.slane %v300, 1
    %v302 = vmax.f32 %v300, %v301
    %v303 = vsel %vm138, %v294, -inf
    %v304 = vrot.slane %v303, 4
    %v305 = vmax.f32 %v303, %v304
    %v306 = vrot.slane %v305, 2
    %v307 = vmax.f32 %v305, %v306
    %v308 = vrot.slane %v307, 1
    %v309 = vmax.f32 %v307, %v308
    %v310 = vsel %vm75, %v302, %v309
    %v311 = vld [vmem:[%s2 + $0x60] sm:$0xff]
    %v312 = vld [vmem:[%s2 + $0x68] sm:$0xff]
    %v313 = vld [vmem:[%s2 + $0x70] sm:$0xff]
    %v314 = vld [vmem:[%s2 + $0x78] sm:$0xff]
    %v315 = vld [vmem:[%s2 + $0x80] sm:$0x1]
    %v316 = vperm.slane %v315, 0
    %v318 = vsel %vm138, %v310, 0
    %320 = vmatpush.msra.mxu0 0.0
    %321 = vmatpush.msra.mxu0 0.0
    %322 = vmatpush.msra.mxu0 0.0
    %323 = vmatpush.msra.mxu0 0.0
    %324 = vmatpush.msra.mxu0 0.0
    %325 = vmatpush.msra.mxu0 0.0
    %326 = vmatpush.msra.mxu0 0.0
    %327 = vmatpush.msra.mxu0 0.0
    %328 = vmatpush.msra.mxu0 0.0
    %329 = vmatpush.msra.mxu0 0.0
    %330 = vmatpush.msra.mxu0 0.0
    %331 = vmatpush.msra.mxu0 0.0
    %332 = vmatpush.msra.mxu0 %v314
    %333 = vmatpush.msra.mxu0 %v313
    %334 = vmatpush.msra.mxu0 %v312
    %335 = vmatpush.msra.mxu0 %v311
    %336 = vmatmul.f32.gmra.mxu0 %v318
    %v337 = vpop.f32.mrf.mxu0
    %v338 = vadd.f32 %v316, %v337
    %339 = vdwg.mxu0
    %vm340 = vcmask 9216
    %341 = vst.msk [vmem:[#allocation4] sm:$0x3] %vm340, %v338
    // Predicated region
    $region10: #{tpu_custom_call.1} parent=1 // pred_check
      _
    $region11: #{tpu_custom_call.1} parent=1 // pred_check_branch
      %343 = sbr.rel (0) target = $region13
    $region12: #{tpu_custom_call.1} parent=1 // pred_region
      %345 = vsyncadd [#allocation5], 0
      %s347 = sshll.u32 [#allocation4], 4
      %s348 = int_to_ptr.vmem [resolvable:$true] %s347
      %s349 = sshll.u32 %s3, 4
      %s350 = int_to_ptr.hbm [resolvable:$true] %s349
      %352 = dma.vmem_to_hbm [thread:$0]  %s348, 32, %s350, [#allocation5]
    $region13: #{tpu_custom_call.1} parent=1 // pred_fallthru
      _
    // Predicated region
    $region14: #{tpu_custom_call.1} parent=1 // pred_check
      _
    $region15: #{tpu_custom_call.1} parent=1 // pred_check_branch
      %354 = sbr.rel (0) target = $region17
    $region16: #{tpu_custom_call.1} parent=1 // pred_region
      %356 = dma.done [#allocation5], 32
    $region17: #{tpu_custom_call.1} parent=1 // pred_fallthru
      _
    %357 = vsyncpa [#allocation5], 1

</llo_original>
